<compile_context>
chip_gen: v5e
topology: v5e:2x2
jax: 0.10.0
libtpu: 0.0.40
codegen_flags: <defaults>
</compile_context>

<pallas_src>
import jax
import jax.numpy as jnp
from jax import lax
from jax.experimental import pallas as pl
from jax.experimental.pallas import tpu as pltpu

# ---------------- small shapes consistent with the module ----------------
N_EXTRA = 8          # N_extra_seq
N_RES   = 16
C_IN    = 25         # OpenFold extra_msa_feat channel count
C_OUT   = 64         # OpenFold c_e
EPS     = 1e-5       # nn.LayerNorm default


# ---------------------------------------------------------------------------
# Fused kernel: y = LayerNorm(x @ W + b) * gamma + beta
#   x_ref : [R, C_IN]      (R = N_extra_seq * N_res, flattened in the wrapper)
#   w_ref : [C_IN, C_OUT]
#   b_ref, g_ref, beta_ref : [1, C_OUT]
#   o_ref : [R, C_OUT]
# ---------------------------------------------------------------------------
def _extra_msa_kernel(x_ref, w_ref, b_ref, g_ref, beta_ref, o_ref):
    x = x_ref[...]
    # Single MXU matmul with f32 accumulation, bias fused on the VPU.
    y = jnp.dot(x, w_ref[...], preferred_element_type=jnp.float32) + b_ref[...]
    # LayerNorm over the channel (last) dim.
    mu = jnp.mean(y, axis=-1, keepdims=True)
    d = y - mu
    var = jnp.mean(d * d, axis=-1, keepdims=True)
    inv = lax.rsqrt(var + EPS)
    # One full-width store of the whole output tile.
    o_ref[...] = (d * inv) * g_ref[...] + beta_ref[...]


def extra_msa_embedder(params, x):
    """x: [..., N_res, C_IN] -> [..., N_res, C_OUT]."""
    lead = x.shape[:-1]
    rows = 1
    for s in lead:
        rows *= s
    x2d = x.reshape(rows, C_IN)

    vmem = pl.BlockSpec(memory_space=pltpu.MemorySpace.VMEM)
    out2d = pl.pallas_call(
        _extra_msa_kernel,
        out_shape=jax.ShapeDtypeStruct((rows, C_OUT), jnp.float32),
        in_specs=[vmem, vmem, vmem, vmem, vmem],
        out_specs=vmem,
    )(x2d, params["w"], params["b"], params["gamma"], params["beta"])
    return out2d.reshape(*lead, C_OUT)


extra_msa_embedder_jit = jax.jit(extra_msa_embedder)


# ---------------------------------------------------------------------------
# Deterministic params (weights stored as [in, out]; y = x @ W + b)
# ---------------------------------------------------------------------------
def init_params(key):
    k0, k1, k2, k3 = jax.random.split(key, 4)
    return {
        "w":     jax.random.normal(k0, (C_IN, C_OUT), jnp.float32) * 0.1,
        "b":     jax.random.normal(k1, (1, C_OUT), jnp.float32) * 0.1,
        # non-trivial affine params so the LayerNorm path is actually exercised
        "gamma": 1.0 + jax.random.normal(k2, (1, C_OUT), jnp.float32) * 0.1,
        "beta":  jax.random.normal(k3, (1, C_OUT), jnp.float32) * 0.1,
    }


# pure-JAX reference (matches torch Linear + LayerNorm(eps=1e-5) in eval mode)
def reference(params, x):
    y = x @ params["w"] + params["b"][0]
    mu = jnp.mean(y, axis=-1, keepdims=True)
    var = jnp.mean((y - mu) ** 2, axis=-1, keepdims=True)
    y = (y - mu) / jnp.sqrt(var + EPS)
    return y * params["gamma"][0] + params["beta"][0]


if __name__ == "__main__":
    key = jax.random.PRNGKey(0)
    kp, kx = jax.random.split(key)
    params = init_params(kp)
    x = jax.random.normal(kx, (N_EXTRA, N_RES, C_IN), jnp.float32)

    out = extra_msa_embedder_jit(params, x)
    jax.block_until_ready(out)

    ref = reference(params, x)
    assert out.shape == (N_EXTRA, N_RES, C_OUT)
    assert jnp.allclose(out, ref, atol=1e-5, rtol=1e-5)
    print("KERNEL_OK")
</pallas_src>

<mosaic_0001>
module attributes {stable_mosaic.version = 11 : i64} {
  func.func @_extra_msa_kernel(%arg0: memref<128x25xf32, #tpu.memory_space<vmem>>, %arg1: memref<25x64xf32, #tpu.memory_space<vmem>>, %arg2: memref<1x64xf32, #tpu.memory_space<vmem>>, %arg3: memref<1x64xf32, #tpu.memory_space<vmem>>, %arg4: memref<1x64xf32, #tpu.memory_space<vmem>>, %arg5: memref<128x64xf32, #tpu.memory_space<vmem>>) attributes {dimension_semantics = [], scalar_prefetch = 0 : i64, scratch_operands = 0 : i64, tpu.core_type = #tpu.core_type<tc>} {
    %c0 = arith.constant 0 : index
    %c0_0 = arith.constant 0 : index
    %0 = vector.load %arg0[%c0, %c0_0] : memref<128x25xf32, #tpu.memory_space<vmem>>, vector<128x25xf32>
    %c0_1 = arith.constant 0 : index
    %c0_2 = arith.constant 0 : index
    %1 = vector.load %arg1[%c0_1, %c0_2] : memref<25x64xf32, #tpu.memory_space<vmem>>, vector<25x64xf32>
    %cst = arith.constant dense<0.000000e+00> : vector<128x64xf32>
    %2 = tpu.matmul %0, %1, %cst {dimension_numbers = #tpu.dot_dimension_numbers<[1], [0], [0], [1], [0, 0, 1, 1], [], []>} : vector<128x25xf32>, vector<25x64xf32>, vector<128x64xf32> -> vector<128x64xf32>
    %c0_3 = arith.constant 0 : index
    %c0_4 = arith.constant 0 : index
    %3 = vector.load %arg2[%c0_3, %c0_4] : memref<1x64xf32, #tpu.memory_space<vmem>>, vector<1x64xf32>
    %4 = vector.broadcast %3 : vector<1x64xf32> to vector<128x64xf32>
    %5 = arith.addf %2, %4 : vector<128x64xf32>
    %cst_5 = arith.constant dense<0.000000e+00> : vector<128xf32>
    %6 = vector.multi_reduction <add>, %5, %cst_5 [1] : vector<128x64xf32> to vector<128xf32>
    %7 = vector.shape_cast %6 : vector<128xf32> to vector<128x1xf32>
    %cst_6 = arith.constant 6.400000e+01 : f32
    %8 = vector.broadcast %cst_6 : f32 to vector<128x1xf32>
    %9 = arith.divf %7, %8 : vector<128x1xf32>
    %10 = vector.broadcast %9 : vector<128x1xf32> to vector<128x64xf32>
    %11 = arith.subf %5, %10 : vector<128x64xf32>
    %12 = arith.mulf %11, %11 : vector<128x64xf32>
    %cst_7 = arith.constant dense<0.000000e+00> : vector<128xf32>
    %13 = vector.multi_reduction <add>, %12, %cst_7 [1] : vector<128x64xf32> to vector<128xf32>
    %14 = vector.shape_cast %13 : vector<128xf32> to vector<128x1xf32>
    %cst_8 = arith.constant 6.400000e+01 : f32
    %15 = vector.broadcast %cst_8 : f32 to vector<128x1xf32>
    %16 = arith.divf %14, %15 : vector<128x1xf32>
    %cst_9 = arith.constant 9.99999974E-6 : f32
    %17 = vector.broadcast %cst_9 : f32 to vector<128x1xf32>
    %18 = arith.addf %16, %17 : vector<128x1xf32>
    %19 = math.rsqrt %18 : vector<128x1xf32>
    %20 = vector.broadcast %19 : vector<128x1xf32> to vector<128x64xf32>
    %21 = arith.mulf %11, %20 : vector<128x64xf32>
    %c0_10 = arith.constant 0 : index
    %c0_11 = arith.constant 0 : index
    %22 = vector.load %arg3[%c0_10, %c0_11] : memref<1x64xf32, #tpu.memory_space<vmem>>, vector<1x64xf32>
    %23 = vector.broadcast %22 : vector<1x64xf32> to vector<128x64xf32>
    %24 = arith.mulf %21, %23 : vector<128x64xf32>
    %c0_12 = arith.constant 0 : index
    %c0_13 = arith.constant 0 : index
    %25 = vector.load %arg4[%c0_12, %c0_13] : memref<1x64xf32, #tpu.memory_space<vmem>>, vector<1x64xf32>
    %26 = vector.broadcast %25 : vector<1x64xf32> to vector<128x64xf32>
    %27 = arith.addf %24, %26 : vector<128x64xf32>
    %c0_14 = arith.constant 0 : index
    %c0_15 = arith.constant 0 : index
    %28 = vector.load %arg5[%c0_14, %c0_15] : memref<128x64xf32, #tpu.memory_space<vmem>>, vector<128x64xf32>
    tpu.vector_store %arg5[%c0_14, %c0_15], %27 {strides = array<i32>} : memref<128x64xf32, #tpu.memory_space<vmem>>, vector<128x64xf32>,
    return
  }
}

</mosaic_0001>

<llo_original>
// kernel: extra_msa_embedder.1
$region0: #{extra_msa_embedder.1}
  #allocation0 [shape = 'u32[]', space=smem, size = 0x4, offset = 0x4, fixed_abs, tag = 'smem constant byte address 0x4 - core index']
  #allocation1 [shape = 'u32[72,128]{1,0:T(1,128)}', space=vmem, size = 0x9000, scoped, tag = 'internal scratch']
  %s0 = inlined_call_operand.hbm [shape: f32[128,25], index: 0, kind: input, shape index: {}]
  %s1 = inlined_call_operand.hbm [shape: f32[25,64], index: 1, kind: input, shape index: {}]
  %s2 = inlined_call_operand.hbm [shape: f32[1,64], index: 2, kind: input, shape index: {}]
  %s3 = inlined_call_operand.vmem [shape: f32[1,64], index: 3, kind: input, shape index: {}]
  %s4 = inlined_call_operand.hbm [shape: f32[1,64], index: 4, kind: input, shape index: {}]
  %s5 = inlined_call_operand.hbm [shape: f32[128,64], index: 5, kind: output, shape index: {}]
  %s6 = sld [smem:[#allocation0]]
  $region46: #{extra_msa_embedder.1} parent=0
    _
  %s8 = ssub.s32 1, %s6
  %s9 = scalar_select 0, %s8, %s6
  $region1: #{extra_msa_embedder.1} parent=0
    #allocation2 [shape = 'u8[65536]{0}', space=vmem, size = 0x10000, scoped, tag = 'input window, operand 0, single buffered']
    #allocation3 [shape = 's32[1]{0}', space=sflag, size = 0x4, scoped, tag = 'scoped memory for extra_msa_embedder.1']
    #allocation4 [shape = 's32[1]{0}', space=sflag, size = 0x4, scoped, tag = 'scoped memory for extra_msa_embedder.1']
    #allocation5 [shape = 'u8[16384]{0}', space=vmem, size = 0x4000, scoped, tag = 'input window, operand 1, single buffered']
    #allocation6 [shape = 's32[1]{0}', space=sflag, size = 0x4, scoped, tag = 'scoped memory for extra_msa_embedder.1']
    #allocation7 [shape = 'u8[512]{0}', space=vmem, size = 0x400, scoped, tag = 'input window, operand 2, single buffered']
    #allocation8 [shape = 'u8[512]{0}', space=vmem, size = 0x400, scoped, tag = 'input window, operand 4, single buffered']
    #allocation9 [shape = 's32[1]{0}', space=sflag, size = 0x4, scoped, tag = 'scoped memory for extra_msa_embedder.1']
    #allocation10 [shape = 'u8[65536]{0}', space=vmem, size = 0x10000, scoped, tag = 'output window, operand 0, single buffered']
    %10 = vsyncpa [#allocation3], 0
    %11 = vsyncpa [#allocation6], 0
    %12 = vsyncpa [#allocation9], 0
    %13 = vsyncpa [#allocation4], 0
    // Predicated region
    $region2: #{extra_msa_embedder.1} parent=1 // pred_check
      _
    $region3: #{extra_msa_embedder.1} parent=1 // pred_check_branch
      %15 = sbr.rel (0) target = $region5
    $region4: #{extra_msa_embedder.1} parent=1 // pred_region
      %17 = vsyncadd [#allocation3], 0
      %s18 = sshll.u32 %s0, 4
      %s19 = int_to_ptr.hbm [resolvable:$true] %s18
      %s20 = sshll.u32 [#allocation2], 4
      %s21 = int_to_ptr.vmem [resolvable:$true] %s20
      %26 = dma.hbm_to_vmem [thread:$0]  %s19, 2048, %s21, [#allocation3], 128, 128, 8
    $region5: #{extra_msa_embedder.1} parent=1 // pred_fallthru
      _
    // Predicated region
    $region6: #{extra_msa_embedder.1} parent=1 // pred_check
      _
    $region7: #{extra_msa_embedder.1} parent=1 // pred_check_branch
      %28 = sbr.rel (0) target = $region9
    $region8: #{extra_msa_embedder.1} parent=1 // pred_region
      %30 = vsyncadd [#allocation6], 0
      %s31 = sshll.u32 %s1, 4
      %s32 = int_to_ptr.hbm [resolvable:$true] %s31
      %s33 = sshll.u32 [#allocation5], 4
      %s34 = int_to_ptr.vmem [resolvable:$true] %s33
      %39 = dma.hbm_to_vmem [thread:$0]  %s32, 512, %s34, [#allocation6], 128, 128, 8
    $region9: #{extra_msa_embedder.1} parent=1 // pred_fallthru
      _
    // Predicated region
    $region10: #{extra_msa_embedder.1} parent=1 // pred_check
      _
    $region11: #{extra_msa_embedder.1} parent=1 // pred_check_branch
      %41 = sbr.rel (0) target = $region13
    $region12: #{extra_msa_embedder.1} parent=1 // pred_region
      %43 = vsyncadd [#allocation6], 0
      %s45 = sshll.u32 %s2, 4
      %s46 = int_to_ptr.hbm [resolvable:$true] %s45
      %s47 = sshll.u32 [#allocation7], 4
      %s48 = int_to_ptr.vmem [resolvable:$true] %s47
      %50 = dma.hbm_to_vmem [thread:$0]  %s46, 16, %s48, [#allocation6]
    $region13: #{extra_msa_embedder.1} parent=1 // pred_fallthru
      _
    // Predicated region
    $region14: #{extra_msa_embedder.1} parent=1 // pred_check
      _
    $region15: #{extra_msa_embedder.1} parent=1 // pred_check_branch
      %52 = sbr.rel (0) target = $region17
    $region16: #{extra_msa_embedder.1} parent=1 // pred_region
      _
    $region17: #{extra_msa_embedder.1} parent=1 // pred_fallthru
      _
    // Predicated region
    $region18: #{extra_msa_embedder.1} parent=1 // pred_check
      _
    $region19: #{extra_msa_embedder.1} parent=1 // pred_check_branch
      %54 = sbr.rel (0) target = $region21
    $region20: #{extra_msa_embedder.1} parent=1 // pred_region
      %56 = vsyncadd [#allocation9], 0
      %s58 = sshll.u32 %s4, 4
      %s59 = int_to_ptr.hbm [resolvable:$true] %s58
      %s60 = sshll.u32 [#allocation8], 4
      %s61 = int_to_ptr.vmem [resolvable:$true] %s60
      %63 = dma.hbm_to_vmem [thread:$0]  %s59, 16, %s61, [#allocation9]
    $region21: #{extra_msa_embedder.1} parent=1 // pred_fallthru
      _
    // Predicated region
    $region22: #{extra_msa_embedder.1} parent=1 // pred_check
      _
    $region23: #{extra_msa_embedder.1} parent=1 // pred_check_branch
      %65 = sbr.rel (0) target = $region25
    $region24: #{extra_msa_embedder.1} parent=1 // pred_region
      %67 = dma.done [#allocation3], 2048
    $region25: #{extra_msa_embedder.1} parent=1 // pred_fallthru
      _
    // Predicated region
    $region26: #{extra_msa_embedder.1} parent=1 // pred_check
      _
    $region27: #{extra_msa_embedder.1} parent=1 // pred_check_branch
      %69 = sbr.rel (0) target = $region29
    $region28: #{extra_msa_embedder.1} parent=1 // pred_region
      %71 = dma.done [#allocation6], 512
    $region29: #{extra_msa_embedder.1} parent=1 // pred_fallthru
      _
    // Predicated region
    $region30: #{extra_msa_embedder.1} parent=1 // pred_check
      _
    $region31: #{extra_msa_embedder.1} parent=1 // pred_check_branch
      %73 = sbr.rel (0) target = $region33
    $region32: #{extra_msa_embedder.1} parent=1 // pred_region
      %75 = dma.done [#allocation6], 16
    $region33: #{extra_msa_embedder.1} parent=1 // pred_fallthru
      _
    // Predicated region
    $region34: #{extra_msa_embedder.1} parent=1 // pred_check
      _
    $region35: #{extra_msa_embedder.1} parent=1 // pred_check_branch
      %77 = sbr.rel (0) target = $region37
    $region36: #{extra_msa_embedder.1} parent=1 // pred_region
      %79 = dma.done [#allocation9], 16
    $region37: #{extra_msa_embedder.1} parent=1 // pred_fallthru
      _
    %v80 = vld [vmem:[#allocation2] sm:$0xff]
    %v81 = vld [vmem:[#allocation2 + $0x8] sm:$0xff]
    %v82 = vld [vmem:[#allocation2 + $0x10] sm:$0xff]
    %v83 = vld [vmem:[#allocation2 + $0x18] sm:$0xff]
    %v84 = vld [vmem:[#allocation2 + $0x20] sm:$0xff]
    %v85 = vld [vmem:[#allocation2 + $0x28] sm:$0xff]
    %v86 = vld [vmem:[#allocation2 + $0x30] sm:$0xff]
    %v87 = vld [vmem:[#allocation2 + $0x38] sm:$0xff]
    %v88 = vld [vmem:[#allocation2 + $0x40] sm:$0xff]
    %v89 = vld [vmem:[#allocation2 + $0x48] sm:$0xff]
    %v90 = vld [vmem:[#allocation2 + $0x50] sm:$0xff]
    %v91 = vld [vmem:[#allocation2 + $0x58] sm:$0xff]
    %v92 = vld [vmem:[#allocation2 + $0x60] sm:$0xff]
    %v93 = vld [vmem:[#allocation2 + $0x68] sm:$0xff]
    %v94 = vld [vmem:[#allocation2 + $0x70] sm:$0xff]
    %v95 = vld [vmem:[#allocation2 + $0x78] sm:$0xff]
    %v96 = vld [vmem:[#allocation5] sm:$0xff]
    %v97 = vld [vmem:[#allocation5 + $0x8] sm:$0xff]
    %v98 = vld [vmem:[#allocation5 + $0x10] sm:$0xff]
    %v99 = vld [vmem:[#allocation5 + $0x18] sm:$0x1]
    %v100 = vld [vmem:[#allocation7] sm:$0x1]
    %v102 = vperm.slane %v100, 0
    %vm104 = vcmask 203776
    %v106 = vsel %vm104, %v80, 0
    %v109 = vsel %vm104, %v81, 0
    %v112 = vsel %vm104, %v82, 0
    %v115 = vsel %vm104, %v83, 0
    %v118 = vsel %vm104, %v84, 0
    %v121 = vsel %vm104, %v85, 0
    %v124 = vsel %vm104, %v86, 0
    %v127 = vsel %vm104, %v87, 0
    %v130 = vsel %vm104, %v88, 0
    %v133 = vsel %vm104, %v89, 0
    %v136 = vsel %vm104, %v90, 0
    %v139 = vsel %vm104, %v91, 0
    %v142 = vsel %vm104, %v92, 0
    %v145 = vsel %vm104, %v93, 0
    %v148 = vsel %vm104, %v94, 0
    %v151 = vsel %vm104, %v95, 0
    %vm153 = vcmask 1040384
    %v155 = vsel %vm153, %v99, 0
    %157 = vmatpush.msra.mxu0 0.0
    %158 = vmatpush.msra.mxu0 0.0
    %159 = vmatpush.msra.mxu0 0.0
    %160 = vmatpush.msra.mxu0 0.0
    %161 = vmatpush.msra.mxu0 0.0
    %162 = vmatpush.msra.mxu0 0.0
    %163 = vmatpush.msra.mxu0 0.0
    %164 = vmatpush.msra.mxu0 0.0
    %165 = vmatpush.msra.mxu0 0.0
    %166 = vmatpush.msra.mxu0 0.0
    %167 = vmatpush.msra.mxu0 0.0
    %168 = vmatpush.msra.mxu0 0.0
    %169 = vmatpush.msra.mxu0 %v155
    %170 = vmatpush.msra.mxu0 %v98
    %171 = vmatpush.msra.mxu0 %v97
    %172 = vmatpush.msra.mxu0 %v96
    %173 = vmatmul.f32.gmra.mxu0 %v106
    %v174 = vpop.f32.mrf.mxu0
    %v175 = vadd.f32 %v102, %v174
    %176 = vmatmul.f32.gmra.mxu0 %v109
    %v177 = vpop.f32.mrf.mxu0
    %v178 = vadd.f32 %v102, %v177
    %179 = vmatmul.f32.gmra.mxu0 %v112
    %v180 = vpop.f32.mrf.mxu0
    %v181 = vadd.f32 %v102, %v180
    %182 = vmatmul.f32.gmra.mxu0 %v115
    %v183 = vpop.f32.mrf.mxu0
    %v184 = vadd.f32 %v102, %v183
    %185 = vmatmul.f32.gmra.mxu0 %v118
    %v186 = vpop.f32.mrf.mxu0
    %v187 = vadd.f32 %v102, %v186
    %188 = vmatmul.f32.gmra.mxu0 %v121
    %v189 = vpop.f32.mrf.mxu0
    %v190 = vadd.f32 %v102, %v189
    %191 = vmatmul.f32.gmra.mxu0 %v124
    %v192 = vpop.f32.mrf.mxu0
    %v193 = vadd.f32 %v102, %v192
    %194 = vmatmul.f32.gmra.mxu0 %v127
    %v195 = vpop.f32.mrf.mxu0
    %v196 = vadd.f32 %v102, %v195
    %197 = vmatmul.f32.gmra.mxu0 %v130
    %v198 = vpop.f32.mrf.mxu0
    %v199 = vadd.f32 %v102, %v198
    %200 = vmatmul.f32.gmra.mxu0 %v133
    %v201 = vpop.f32.mrf.mxu0
    %v202 = vadd.f32 %v102, %v201
    %203 = vmatmul.f32.gmra.mxu0 %v136
    %v204 = vpop.f32.mrf.mxu0
    %v205 = vadd.f32 %v102, %v204
    %206 = vmatmul.f32.gmra.mxu0 %v139
    %v207 = vpop.f32.mrf.mxu0
    %v208 = vadd.f32 %v102, %v207
    %209 = vmatmul.f32.gmra.mxu0 %v142
    %v210 = vpop.f32.mrf.mxu0
    %v211 = vadd.f32 %v102, %v210
    %212 = vmatmul.f32.gmra.mxu0 %v145
    %v213 = vpop.f32.mrf.mxu0
    %v214 = vadd.f32 %v102, %v213
    %215 = vmatmul.f32.gmra.mxu0 %v148
    %v216 = vpop.f32.mrf.mxu0
    %v217 = vadd.f32 %v102, %v216
    %218 = vmatmul.f32.gmra.mxu0 %v151
    %v219 = vpop.f32.mrf.mxu0
    %v220 = vadd.f32 %v102, %v219
    %221 = vdwg.mxu0
    %vm222 = vcmask 523264
    %v223 = vsel %vm222, %v175, 0.0
    %224 = vadd.xlane.f32.xlu0 %v223
    %v225 = vpop.xlane.xlu0 %224
    %v226 = vsel %vm222, %v178, 0.0
    %227 = vadd.xlane.f32.xlu0 %v226
    %v228 = vpop.xlane.xlu0 %227
    %v229 = vsel %vm222, %v181, 0.0
    %230 = vadd.xlane.f32.xlu0 %v229
    %v231 = vpop.xlane.xlu0 %230
    %v232 = vsel %vm222, %v184, 0.0
    %233 = vadd.xlane.f32.xlu0 %v232
    %v234 = vpop.xlane.xlu0 %233
    %v235 = vsel %vm222, %v187, 0.0
    %236 = vadd.xlane.f32.xlu0 %v235
    %v237 = vpop.xlane.xlu0 %236
    %v238 = vsel %vm222, %v190, 0.0
    %239 = vadd.xlane.f32.xlu0 %v238
    %v240 = vpop.xlane.xlu0 %239
    %v241 = vsel %vm222, %v193, 0.0
    %242 = vadd.xlane.f32.xlu0 %v241
    %v243 = vpop.xlane.xlu0 %242
    %v244 = vsel %vm222, %v196, 0.0
    %245 = vadd.xlane.f32.xlu0 %v244
    %v246 = vpop.xlane.xlu0 %245
    %v247 = vsel %vm222, %v199, 0.0
    %248 = vadd.xlane.f32.xlu0 %v247
    %v249 = vpop.xlane.xlu0 %248
    %v250 = vsel %vm222, %v202, 0.0
    %251 = vadd.xlane.f32.xlu0 %v250
    %v252 = vpop.xlane.xlu0 %251
    %v253 = vsel %vm222, %v205, 0.0
    %254 = vadd.xlane.f32.xlu0 %v253
    %v255 = vpop.xlane.xlu0 %254
    %v256 = vsel %vm222, %v208, 0.0
    %257 = vadd.xlane.f32.xlu0 %v256
    %v258 = vpop.xlane.xlu0 %257
    %v259 = vsel %vm222, %v211, 0.0
    %260 = vadd.xlane.f32.xlu0 %v259
    %v261 = vpop.xlane.xlu0 %260
    %v262 = vsel %vm222, %v214, 0.0
    %263 = vadd.xlane.f32.xlu0 %v262
    %v264 = vpop.xlane.xlu0 %263
    %v265 = vsel %vm222, %v217, 0.0
    %266 = vadd.xlane.f32.xlu0 %v265
    %v267 = vpop.xlane.xlu0 %266
    %v268 = vsel %vm222, %v220, 0.0
    %269 = vadd.xlane.f32.xlu0 %v268
    %v270 = vpop.xlane.xlu0 %269
    %v271 = vrcp.pop 64.0
    %v272 = vmul.f32 64.0, %v271
    %v273 = vsub.f32 1.0, %v272
    %v274 = vmul.f32 %v271, %v273
    %v275 = vadd.f32 %v271, %v274
    %vm276 = vweird.f32 %v271
    %v277 = vsel %vm276, %v271, %v275
    %v278 = vmul.f32 %v225, %v277
    %v279 = vmul.f32 %v228, %v277
    %v280 = vmul.f32 %v231, %v277
    %v281 = vmul.f32 %v234, %v277
    %v282 = vmul.f32 %v237, %v277
    %v283 = vmul.f32 %v240, %v277
    %v284 = vmul.f32 %v243, %v277
    %v285 = vmul.f32 %v246, %v277
    %v286 = vmul.f32 %v249, %v277
    %v287 = vmul.f32 %v252, %v277
    %v288 = vmul.f32 %v255, %v277
    %v289 = vmul.f32 %v258, %v277
    %v290 = vmul.f32 %v261, %v277
    %v291 = vmul.f32 %v264, %v277
    %v292 = vmul.f32 %v267, %v277
    %v293 = vmul.f32 %v270, %v277
    %v294 = vsub.f32 %v175, %v278
    %v295 = vsub.f32 %v178, %v279
    %v296 = vsub.f32 %v181, %v280
    %v297 = vsub.f32 %v184, %v281
    %v298 = vsub.f32 %v187, %v282
    %v299 = vsub.f32 %v190, %v283
    %v300 = vsub.f32 %v193, %v284
    %v301 = vsub.f32 %v196, %v285
    %v302 = vsub.f32 %v199, %v286
    %v303 = vsub.f32 %v202, %v287
    %v304 = vsub.f32 %v205, %v288
    %v305 = vsub.f32 %v208, %v289
    %v306 = vsub.f32 %v211, %v290
    %v307 = vsub.f32 %v214, %v291
    %v308 = vsub.f32 %v217, %v292
    %v309 = vsub.f32 %v220, %v293
    %v310 = vmul.f32 %v294, %v294
    %v311 = vmul.f32 %v295, %v295
    %v312 = vmul.f32 %v296, %v296
    %v313 = vmul.f32 %v297, %v297
    %v314 = vmul.f32 %v298, %v298
    %v315 = vmul.f32 %v299, %v299
    %v316 = vmul.f32 %v300, %v300
    %v317 = vmul.f32 %v301, %v301
    %v318 = vmul.f32 %v302, %v302
    %v319 = vmul.f32 %v303, %v303
    %v320 = vmul.f32 %v304, %v304
    %v321 = vmul.f32 %v305, %v305
    %v322 = vmul.f32 %v306, %v306
    %v323 = vmul.f32 %v307, %v307
    %v324 = vmul.f32 %v308, %v308
    %v325 = vmul.f32 %v309, %v309
    %v326 = vsel %vm222, %v310, 0.0
    %327 = vadd.xlane.f32.xlu0 %v326
    %v328 = vpop.xlane.xlu0 %327
    %v329 = vsel %vm222, %v311, 0.0
    %330 = vadd.xlane.f32.xlu0 %v329
    %v331 = vpop.xlane.xlu0 %330
    %v332 = vsel %vm222, %v312, 0.0
    %333 = vadd.xlane.f32.xlu0 %v332
    %v334 = vpop.xlane.xlu0 %333
    %v335 = vsel %vm222, %v313, 0.0
    %336 = vadd.xlane.f32.xlu0 %v335
    %v337 = vpop.xlane.xlu0 %336
    %v338 = vsel %vm222, %v314, 0.0
    %339 = vadd.xlane.f32.xlu0 %v338
    %v340 = vpop.xlane.xlu0 %339
    %v341 = vsel %vm222, %v315, 0.0
    %342 = vadd.xlane.f32.xlu0 %v341
    %v343 = vpop.xlane.xlu0 %342
    %v344 = vsel %vm222, %v316, 0.0
    %345 = vadd.xlane.f32.xlu0 %v344
    %v346 = vpop.xlane.xlu0 %345
    %v347 = vsel %vm222, %v317, 0.0
    %348 = vadd.xlane.f32.xlu0 %v347
    %v349 = vpop.xlane.xlu0 %348
    %v350 = vsel %vm222, %v318, 0.0
    %351 = vadd.xlane.f32.xlu0 %v350
    %v352 = vpop.xlane.xlu0 %351
    %v353 = vsel %vm222, %v319, 0.0
    %354 = vadd.xlane.f32.xlu0 %v353
    %v355 = vpop.xlane.xlu0 %354
    %v356 = vsel %vm222, %v320, 0.0
    %357 = vadd.xlane.f32.xlu0 %v356
    %v358 = vpop.xlane.xlu0 %357
    %v359 = vsel %vm222, %v321, 0.0
    %360 = vadd.xlane.f32.xlu0 %v359
    %v361 = vpop.xlane.xlu0 %360
    %v362 = vsel %vm222, %v322, 0.0
    %363 = vadd.xlane.f32.xlu0 %v362
    %v364 = vpop.xlane.xlu0 %363
    %v365 = vsel %vm222, %v323, 0.0
    %366 = vadd.xlane.f32.xlu0 %v365
    %v367 = vpop.xlane.xlu0 %366
    %v368 = vsel %vm222, %v324, 0.0
    %369 = vadd.xlane.f32.xlu0 %v368
    %v370 = vpop.xlane.xlu0 %369
    %v371 = vsel %vm222, %v325, 0.0
    %372 = vadd.xlane.f32.xlu0 %v371
    %v373 = vpop.xlane.xlu0 %372
    %v374 = vmul.f32 %v328, %v277
    %v375 = vmul.f32 %v331, %v277
    %v376 = vmul.f32 %v334, %v277
    %v377 = vmul.f32 %v337, %v277
    %v378 = vmul.f32 %v340, %v277
    %v379 = vmul.f32 %v343, %v277
    %v380 = vmul.f32 %v346, %v277
    %v381 = vmul.f32 %v349, %v277
    %v382 = vmul.f32 %v352, %v277
    %v383 = vmul.f32 %v355, %v277
    %v384 = vmul.f32 %v358, %v277
    %v385 = vmul.f32 %v361, %v277
    %v386 = vmul.f32 %v364, %v277
    %v387 = vmul.f32 %v367, %v277
    %v388 = vmul.f32 %v370, %v277
    %v389 = vmul.f32 %v373, %v277
    %v390 = vadd.f32 %v374, 1e-05
    %v391 = vadd.f32 %v375, 1e-05
    %v392 = vadd.f32 %v376, 1e-05
    %v393 = vadd.f32 %v377, 1e-05
    %v394 = vadd.f32 %v378, 1e-05
    %v395 = vadd.f32 %v379, 1e-05
    %v396 = vadd.f32 %v380, 1e-05
    %v397 = vadd.f32 %v381, 1e-05
    %v398 = vadd.f32 %v382, 1e-05
    %v399 = vadd.f32 %v383, 1e-05
    %v400 = vadd.f32 %v384, 1e-05
    %v401 = vadd.f32 %v385, 1e-05
    %v402 = vadd.f32 %v386, 1e-05
    %v403 = vadd.f32 %v387, 1e-05
    %v404 = vadd.f32 %v388, 1e-05
    %v405 = vadd.f32 %v389, 1e-05
    %v406 = vrsqrt.pop %v390
    %v407 = vmul.f32 %v406, %v390
    %v408 = vmul.f32 %v407, %v406
    %v409 = vmul.f32 0.5, %v408
    %v410 = vsub.f32 1.5, %v409
    %v411 = vmul.f32 %v406, %v410
    %vm412 = vweird.f32 %v390
    %vm413 = vweird.f32 %v406
    %vm414 = vmor %vm412, %vm413
    %v415 = vsel %vm414, %v406, %v411
    %v416 = vrsqrt.pop %v391
    %v417 = vmul.f32 %v416, %v391
    %v418 = vmul.f32 %v417, %v416
    %v419 = vmul.f32 0.5, %v418
    %v420 = vsub.f32 1.5, %v419
    %v421 = vmul.f32 %v416, %v420
    %vm422 = vweird.f32 %v391
    %vm423 = vweird.f32 %v416
    %vm424 = vmor %vm422, %vm423
    %v425 = vsel %vm424, %v416, %v421
    %v426 = vrsqrt.pop %v392
    %v427 = vmul.f32 %v426, %v392
    %v428 = vmul.f32 %v427, %v426
    %v429 = vmul.f32 0.5, %v428
    %v430 = vsub.f32 1.5, %v429
    %v431 = vmul.f32 %v426, %v430
    %vm432 = vweird.f32 %v392
    %vm433 = vweird.f32 %v426
    %vm434 = vmor %vm432, %vm433
    %v435 = vsel %vm434, %v426, %v431
    %v436 = vrsqrt.pop %v393
    %v437 = vmul.f32 %v436, %v393
    %v438 = vmul.f32 %v437, %v436
    %v439 = vmul.f32 0.5, %v438
    %v440 = vsub.f32 1.5, %v439
    %v441 = vmul.f32 %v436, %v440
    %vm442 = vweird.f32 %v393
    %vm443 = vweird.f32 %v436
    %vm444 = vmor %vm442, %vm443
    %v445 = vsel %vm444, %v436, %v441
    %v446 = vrsqrt.pop %v394
    %v447 = vmul.f32 %v446, %v394
    %v448 = vmul.f32 %v447, %v446
    %v449 = vmul.f32 0.5, %v448
    %v450 = vsub.f32 1.5, %v449
    %v451 = vmul.f32 %v446, %v450
    %vm452 = vweird.f32 %v394
    %vm453 = vweird.f32 %v446
    %vm454 = vmor %vm452, %vm453
    %v455 = vsel %vm454, %v446, %v451
    %v456 = vrsqrt.pop %v395
    %v457 = vmul.f32 %v456, %v395
    %v458 = vmul.f32 %v457, %v456
    %v459 = vmul.f32 0.5, %v458
    %v460 = vsub.f32 1.5, %v459
    %v461 = vmul.f32 %v456, %v460
    %vm462 = vweird.f32 %v395
    %vm463 = vweird.f32 %v456
    %vm464 = vmor %vm462, %vm463
    %v465 = vsel %vm464, %v456, %v461
    %v466 = vrsqrt.pop %v396
    %v467 = vmul.f32 %v466, %v396
    %v468 = vmul.f32 %v467, %v466
    %v469 = vmul.f32 0.5, %v468
    %v470 = vsub.f32 1.5, %v469
    %v471 = vmul.f32 %v466, %v470
    %vm472 = vweird.f32 %v396
    %vm473 = vweird.f32 %v466
    %vm474 = vmor %vm472, %vm473
    %v475 = vsel %vm474, %v466, %v471
    %v476 = vrsqrt.pop %v397
    %v477 = vmul.f32 %v476, %v397
    %v478 = vmul.f32 %v477, %v476
    %v479 = vmul.f32 0.5, %v478
    %v480 = vsub.f32 1.5, %v479
    %v481 = vmul.f32 %v476, %v480
    %vm482 = vweird.f32 %v397
    %vm483 = vweird.f32 %v476
    %vm484 = vmor %vm482, %vm483
    %v485 = vsel %vm484, %v476, %v481
    %v486 = vrsqrt.pop %v398
    %v487 = vmul.f32 %v486, %v398
    %v488 = vmul.f32 %v487, %v486
    %v489 = vmul.f32 0.5, %v488
    %v490 = vsub.f32 1.5, %v489
    %v491 = vmul.f32 %v486, %v490
    %vm492 = vweird.f32 %v398
    %vm493 = vweird.f32 %v486
    %vm494 = vmor %vm492, %vm493
    %v495 = vsel %vm494, %v486, %v491
    %v496 = vrsqrt.pop %v399
    %v497 = vmul.f32 %v496, %v399
    %v498 = vmul.f32 %v497, %v496
    %v499 = vmul.f32 0.5, %v498
    %v500 = vsub.f32 1.5, %v499
    %v501 = vmul.f32 %v496, %v500
    %vm502 = vweird.f32 %v399
    %vm503 = vweird.f32 %v496
    %vm504 = vmor %vm502, %vm503
    %v505 = vsel %vm504, %v496, %v501
    %v506 = vrsqrt.pop %v400
    %v507 = vmul.f32 %v506, %v400
    %v508 = vmul.f32 %v507, %v506
    %v509 = vmul.f32 0.5, %v508
    %v510 = vsub.f32 1.5, %v509
    %v511 = vmul.f32 %v506, %v510
    %vm512 = vweird.f32 %v400
    %vm513 = vweird.f32 %v506
    %vm514 = vmor %vm512, %vm513
    %v515 = vsel %vm514, %v506, %v511
    %v516 = vrsqrt.pop %v401
    %v517 = vmul.f32 %v516, %v401
    %v518 = vmul.f32 %v517, %v516
    %v519 = vmul.f32 0.5, %v518
    %v520 = vsub.f32 1.5, %v519
    %v521 = vmul.f32 %v516, %v520
    %vm522 = vweird.f32 %v401
    %vm523 = vweird.f32 %v516
    %vm524 = vmor %vm522, %vm523
    %v525 = vsel %vm524, %v516, %v521
    %v526 = vrsqrt.pop %v402
    %v527 = vmul.f32 %v526, %v402
    %v528 = vmul.f32 %v527, %v526
    %v529 = vmul.f32 0.5, %v528
    %v530 = vsub.f32 1.5, %v529
    %v531 = vmul.f32 %v526, %v530
    %vm532 = vweird.f32 %v402
    %vm533 = vweird.f32 %v526
    %vm534 = vmor %vm532, %vm533
    %v535 = vsel %vm534, %v526, %v531
    %v536 = vrsqrt.pop %v403
    %v537 = vmul.f32 %v536, %v403
    %v538 = vmul.f32 %v537, %v536
    %v539 = vmul.f32 0.5, %v538
    %v540 = vsub.f32 1.5, %v539
    %v541 = vmul.f32 %v536, %v540
    %vm542 = vweird.f32 %v403
    %vm543 = vweird.f32 %v536
    %vm544 = vmor %vm542, %vm543
    %v545 = vsel %vm544, %v536, %v541
    %v546 = vrsqrt.pop %v404
    %v547 = vmul.f32 %v546, %v404
    %v548 = vmul.f32 %v547, %v546
    %v549 = vmul.f32 0.5, %v548
    %v550 = vsub.f32 1.5, %v549
    %v551 = vmul.f32 %v546, %v550
    %vm552 = vweird.f32 %v404
    %vm553 = vweird.f32 %v546
    %vm554 = vmor %vm552, %vm553
    %v555 = vsel %vm554, %v546, %v551
    %v556 = vrsqrt.pop %v405
    %v557 = vmul.f32 %v556, %v405
    %v558 = vmul.f32 %v557, %v556
    %v559 = vmul.f32 0.5, %v558
    %v560 = vsub.f32 1.5, %v559
    %v561 = vmul.f32 %v556, %v560
    %vm562 = vweird.f32 %v405
    %vm563 = vweird.f32 %v556
    %vm564 = vmor %vm562, %vm563
    %v565 = vsel %vm564, %v556, %v561
    %v566 = vmul.f32 %v294, %v415
    %v567 = vmul.f32 %v295, %v425
    %v568 = vmul.f32 %v296, %v435
    %v569 = vmul.f32 %v297, %v445
    %v570 = vmul.f32 %v298, %v455
    %v571 = vmul.f32 %v299, %v465
    %v572 = vmul.f32 %v300, %v475
    %v573 = vmul.f32 %v301, %v485
    %v574 = vmul.f32 %v302, %v495
    %v575 = vmul.f32 %v303, %v505
    %v576 = vmul.f32 %v304, %v515
    %v577 = vmul.f32 %v305, %v525
    %v578 = vmul.f32 %v306, %v535
    %v579 = vmul.f32 %v307, %v545
    %v580 = vmul.f32 %v308, %v555
    %v581 = vmul.f32 %v309, %v565
    %v582 = vld [vmem:[%s3] sm:$0x1]
    %v584 = vperm.slane %v582, 0
    %v586 = vmul.f32 %v566, %v584
    %v587 = vmul.f32 %v567, %v584
    %v588 = vmul.f32 %v568, %v584
    %v589 = vmul.f32 %v569, %v584
    %v590 = vmul.f32 %v570, %v584
    %v591 = vmul.f32 %v571, %v584
    %v592 = vmul.f32 %v572, %v584
    %v593 = vmul.f32 %v573, %v584
    %v594 = vmul.f32 %v574, %v584
    %v595 = vmul.f32 %v575, %v584
    %v596 = vmul.f32 %v576, %v584
    %v597 = vmul.f32 %v577, %v584
    %v598 = vmul.f32 %v578, %v584
    %v599 = vmul.f32 %v579, %v584
    %v600 = vmul.f32 %v580, %v584
    %v601 = vmul.f32 %v581, %v584
    %v602 = vld [vmem:[#allocation8] sm:$0x1]
    %v604 = vperm.slane %v602, 0
    %v606 = vadd.f32 %v586, %v604
    %v607 = vadd.f32 %v587, %v604
    %v608 = vadd.f32 %v588, %v604
    %v609 = vadd.f32 %v589, %v604
    %v610 = vadd.f32 %v590, %v604
    %v611 = vadd.f32 %v591, %v604
    %v612 = vadd.f32 %v592, %v604
    %v613 = vadd.f32 %v593, %v604
    %v614 = vadd.f32 %v594, %v604
    %v615 = vadd.f32 %v595, %v604
    %v616 = vadd.f32 %v596, %v604
    %v617 = vadd.f32 %v597, %v604
    %v618 = vadd.f32 %v598, %v604
    %v619 = vadd.f32 %v599, %v604
    %v620 = vadd.f32 %v600, %v604
    %v621 = vadd.f32 %v601, %v604
    %622 = vst.msk [vmem:[#allocation10] sm:$0xff] %vm222, %v606
    %623 = vst.msk [vmem:[#allocation10 + $0x8] sm:$0xff] %vm222, %v607
    %624 = vst.msk [vmem:[#allocation10 + $0x10] sm:$0xff] %vm222, %v608
    %625 = vst.msk [vmem:[#allocation10 + $0x18] sm:$0xff] %vm222, %v609
    %626 = vst.msk [vmem:[#allocation10 + $0x20] sm:$0xff] %vm222, %v610
    %627 = vst.msk [vmem:[#allocation10 + $0x28] sm:$0xff] %vm222, %v611
    %628 = vst.msk [vmem:[#allocation10 + $0x30] sm:$0xff] %vm222, %v612
    %629 = vst.msk [vmem:[#allocation10 + $0x38] sm:$0xff] %vm222, %v613
    %630 = vst.msk [vmem:[#allocation10 + $0x40] sm:$0xff] %vm222, %v614
    %631 = vst.msk [vmem:[#allocation10 + $0x48] sm:$0xff] %vm222, %v615
    %632 = vst.msk [vmem:[#allocation10 + $0x50] sm:$0xff] %vm222, %v616
    %633 = vst.msk [vmem:[#allocation10 + $0x58] sm:$0xff] %vm222, %v617
    %634 = vst.msk [vmem:[#allocation10 + $0x60] sm:$0xff] %vm222, %v618
    %635 = vst.msk [vmem:[#allocation10 + $0x68] sm:$0xff] %vm222, %v619
    %636 = vst.msk [vmem:[#allocation10 + $0x70] sm:$0xff] %vm222, %v620
    %637 = vst.msk [vmem:[#allocation10 + $0x78] sm:$0xff] %vm222, %v621
    // Predicated region
    $region38: #{extra_msa_embedder.1} parent=1 // pred_check
      _
    $region39: #{extra_msa_embedder.1} parent=1 // pred_check_branch
      %639 = sbr.rel (0) target = $region41
    $region40: #{extra_msa_embedder.1} parent=1 // pred_region
      %641 = vsyncadd [#allocation4], 0
      %s642 = sshll.u32 [#allocation10], 4
      %s643 = int_to_ptr.vmem [resolvable:$true] %s642
      %s644 = sshll.u32 %s5, 4
      %s645 = int_to_ptr.hbm [resolvable:$true] %s644
      %650 = dma.vmem_to_hbm [thread:$0]  %s643, 2048, %s645, [#allocation4], 128, 128, 8
    $region41: #{extra_msa_embedder.1} parent=1 // pred_fallthru
      _
    // Predicated region
    $region42: #{extra_msa_embedder.1} parent=1 // pred_check
      _
    $region43: #{extra_msa_embedder.1} parent=1 // pred_check_branch
      %652 = sbr.rel (0) target = $region45
    $region44: #{extra_msa_embedder.1} parent=1 // pred_region
      %654 = dma.done [#allocation4], 2048
    $region45: #{extra_msa_embedder.1} parent=1 // pred_fallthru
      _
    %655 = vsyncpa [#allocation3], 1
    %656 = vsyncpa [#allocation6], 1
    %657 = vsyncpa [#allocation9], 1
    %658 = vsyncpa [#allocation4], 1

</llo_original>
